<compile_context>
chip_gen: v6e
topology: v6e:2x2x1
jax: 0.10.0
libtpu: 0.0.40
codegen_flags: <defaults>
</compile_context>

<pallas_src>
import numpy as np
import jax
import jax.numpy as jnp
from jax.experimental import pallas as pl
from jax.experimental.pallas import tpu as pltpu


# ----------------------------------------------------------------------------
# Pallas kernel.  Grid = (B, C_in // CT).
# ----------------------------------------------------------------------------
def attention_gate_kernel(xg_ref,     # (1, C_tot, S2) [strided x ; gating], channel-sublane
                          x_ref,      # (1, CT, S)     full-res x tile, spatial flattened (lane-dense)
                          wf_ref,     # (C_in, C_tot)  fused [theta_x | phi_g] weight
                          bc_ref,     # (C_in, 1)      fused bias (bt + bp)
                          wpsi_ref,   # (C_in, 1)      psi weight
                          bpsi_ref,   # (1, 1)         psi bias
                          ah_ref,     # (H, H2)        row interpolation matrix
                          awt_ref,    # (W2, W)        column interpolation matrix (transposed)
                          o_ref,      # (1, CT, S)     output tile (flattened spatial)
                          sig2d_ref,  # VMEM (H2, W2)  scratch: low-res gate
                          upf_ref):   # VMEM (1, S)    scratch: upsampled, flattened gate
    ct = pl.program_id(1)

    # The gate depends only on the batch element -> compute it once per b
    # (channel-tile axis is the inner, "arbitrary" grid axis).
    @pl.when(ct == 0)
    def _compute_gate():
        # Fused theta_x / phi_g 1x1 convs as one MXU matmul:
        # channels on sublanes, flattened low-res spatial on lanes.
        xg = xg_ref[0]                                               # (C_tot, S2)
        pre = jnp.dot(wf_ref[...], xg, preferred_element_type=jnp.float32)
        act = jnp.maximum(pre + bc_ref[...], 0.0)                    # (C_in, S2)

        # psi: 1x1 conv to a single channel == weighted sublane reduction
        # (keeps the spatial axis on lanes -> lane-dense sigmoid).
        psi = jnp.sum(act * wpsi_ref[...], axis=0, keepdims=True) + bpsi_ref[...]
        sig = jax.nn.sigmoid(psi)                                    # (1, S2)

        # Unflatten (1, H2*W2) -> (H2, W2) scratch via static row slices
        # (avoids an in-kernel lane-splitting reshape).  Once per batch elem.
        h2n, w2n = sig2d_ref.shape
        for h2 in range(h2n):
            sig2d_ref[h2:h2 + 1, :] = sig[:, h2 * w2n:(h2 + 1) * w2n]

        # Separable align_corners bilinear 2x upsample: up = A_h @ sig2d @ A_w^T
        t = jnp.dot(sig2d_ref[...], awt_ref[...],
                    preferred_element_type=jnp.float32)              # (H2, W)
        up2d = jnp.dot(ah_ref[...], t,
                       preferred_element_type=jnp.float32)           # (H, W)

        # Flatten (H, W) -> (1, H*W) scratch row so the per-channel-tile gate
        # multiply / output store is fully lane-dense.  Static row copies,
        # executed once per batch element.
        hn, wn = up2d.shape
        for h in range(hn):
            upf_ref[:, h * wn:(h + 1) * wn] = up2d[h:h + 1, :]

    # Gate the full-resolution x tile: (1, S) broadcast over the channel tile.
    o_ref[0] = upf_ref[...] * x_ref[0]


# ----------------------------------------------------------------------------
# Helpers.
# ----------------------------------------------------------------------------
def _interp_matrix(n_out, n_in):
    """1-D align_corners=True bilinear interpolation matrix (n_out, n_in)."""
    m = np.zeros((n_out, n_in), dtype=np.float32)
    if n_out == 1:
        m[0, 0] = 1.0
        return m
    scale = (n_in - 1) / (n_out - 1)
    for i in range(n_out):
        src = i * scale
        i0 = int(np.floor(src))
        i1 = min(i0 + 1, n_in - 1)
        w = src - i0
        m[i, i0] += 1.0 - w
        m[i, i1] += w
    return m


def _pick_channel_tile(c_in, s, budget_bytes):
    """Channel tile: full C_in if it fits, else the largest multiple-of-8
    divisor of C_in within the budget (keeps the (8, 128) BlockSpec rule for
    the (1, CT, S) layout)."""
    per_ch = s * 4
    max_ct = max(1, budget_bytes // per_ch)
    if c_in <= max_ct:
        return c_in
    best = None
    for d in range(8, max_ct + 1, 8):
        if c_in % d == 0:
            best = d
    return best if best is not None else c_in


# ----------------------------------------------------------------------------
# Wrapper: layout plumbing (reshapes only, no transposes) + pallas_call.
# ----------------------------------------------------------------------------
def attention_block(x, gating, params, *, channel_tile_budget_bytes=4 * 1024 * 1024):
    """x: (B, C_in, H, W) NCHW; gating: (B, C_g, H//2, W//2) NCHW -> (B, C_in, H, W)."""
    B, C_in, H, W = x.shape
    Bg, C_g, H2, W2 = gating.shape
    assert Bg == B and H % 2 == 0 and W % 2 == 0 and H2 == H // 2 and W2 == W // 2
    S2 = H2 * W2
    S = H * W
    C_tot = C_in + C_g

    wt, bt, wp, bp, wpsi, bpsi = params

    # Low-res inputs in native channel-major layout: strided x (stride-2 1x1 conv
    # input) and gating, spatially flattened and concatenated along channels.
    xs = x[:, :, ::2, ::2].reshape(B, C_in, S2)
    gf = gating.reshape(B, C_g, S2)
    xg = jnp.concatenate([xs, gf], axis=1).astype(jnp.float32)       # (B, C_tot, S2)

    # Full-res x: flatten spatial (contiguous reshape, free) -> lane-dense tiles.
    x_flat = x.reshape(B, C_in, S).astype(jnp.float32)               # (B, C_in, S)

    # Fused conv parameters.
    wf = jnp.concatenate([wt, wp], axis=1).astype(jnp.float32)       # (C_in, C_tot)
    bc = (bt + bp).reshape(C_in, 1).astype(jnp.float32)
    wpsi_c = wpsi.reshape(C_in, 1).astype(jnp.float32)
    bpsi_r = bpsi.reshape(1, 1).astype(jnp.float32)

    # Separable align_corners bilinear interpolation matrices.
    a_h = jnp.asarray(_interp_matrix(H, H2))                         # (H, H2)
    a_wt = jnp.asarray(_interp_matrix(W, W2).T)                      # (W2, W)

    ct_size = _pick_channel_tile(C_in, S, channel_tile_budget_bytes)
    n_ct = C_in // ct_size

    def const(shape):
        return pl.BlockSpec(shape, lambda b, c: (0,) * len(shape))

    cost = pl.CostEstimate(
        flops=int(2 * B * C_in * C_tot * S2            # fused 1x1 convs
                  + 2 * B * C_in * S2                  # psi reduction
                  + 2 * B * (H2 * W2 * W + H * H2 * W) # separable upsample
                  + B * C_in * S),                     # gate multiply
        transcendentals=int(B * S2),                   # sigmoid
        bytes_accessed=int(4 * (2 * B * C_in * S + B * C_tot * S2
                                + C_in * (C_tot + 2) + H * H2 + W2 * W + 1)),
    )

    out = pl.pallas_call(
        attention_gate_kernel,
        out_shape=jax.ShapeDtypeStruct((B, C_in, S), jnp.float32),
        grid_spec=pltpu.PrefetchScalarGridSpec(
            num_scalar_prefetch=0,
            grid=(B, n_ct),
            in_specs=[
                pl.BlockSpec((1, C_tot, S2), lambda b, c: (b, 0, 0)),   # xg (low-res)
                pl.BlockSpec((1, ct_size, S), lambda b, c: (b, c, 0)),  # x tile (flattened)
                const((C_in, C_tot)),                                   # fused weight
                const((C_in, 1)),                                       # fused bias
                const((C_in, 1)),                                       # psi weight
                const((1, 1)),                                          # psi bias
                const((H, H2)),                                         # A_h
                const((W2, W)),                                         # A_w^T
            ],
            out_specs=pl.BlockSpec((1, ct_size, S), lambda b, c: (b, c, 0)),
            scratch_shapes=[
                pltpu.VMEM((H2, W2), jnp.float32),   # low-res gate
                pltpu.VMEM((1, S), jnp.float32),     # upsampled flat gate (reused over ct)
            ],
        ),
        compiler_params=pltpu.CompilerParams(
            dimension_semantics=("parallel", "arbitrary"),
            vmem_limit_bytes=32 * 1024 * 1024,
        ),
        cost_estimate=cost,
    )(xg, x_flat, wf, bc, wpsi_c, bpsi_r, a_h, a_wt)

    return out.reshape(B, C_in, H, W)   # free reshape back to NCHW


# ----------------------------------------------------------------------------
# Pure numpy reference (independent of the kernel math) for verification.
# ----------------------------------------------------------------------------
def reference_forward(x, g, wt, bt, wp, bp, wpsi, bpsi):
    x = np.asarray(x, np.float64)
    g = np.asarray(g, np.float64)
    xs = x[:, :, ::2, ::2]
    theta = np.einsum('oc,bchw->bohw', wt, xs) + bt[None, :, None, None]
    phi = np.einsum('oc,bchw->bohw', wp, g) + bp[None, :, None, None]
    add = np.maximum(theta + phi, 0.0)
    psi = np.einsum('c,bchw->bhw', wpsi, add) + bpsi
    sig = 1.0 / (1.0 + np.exp(-psi))
    B, H2, W2 = sig.shape
    H, W = 2 * H2, 2 * W2
    up = np.zeros((B, H, W))
    for i in range(H):
        si = i * (H2 - 1) / (H - 1)
        i0 = int(np.floor(si)); i1 = min(i0 + 1, H2 - 1); wi = si - i0
        for j in range(W):
            sj = j * (W2 - 1) / (W - 1)
            j0 = int(np.floor(sj)); j1 = min(j0 + 1, W2 - 1); wj = sj - j0
            up[:, i, j] = ((1 - wi) * (1 - wj) * sig[:, i0, j0]
                           + (1 - wi) * wj * sig[:, i0, j1]
                           + wi * (1 - wj) * sig[:, i1, j0]
                           + wi * wj * sig[:, i1, j1])
    return up[:, None] * x


if __name__ == "__main__":
    B, C_in, C_g, H, W = 2, 4, 8, 16, 16
    H2, W2 = H // 2, W // 2

    key = jax.random.PRNGKey(0)
    k1, k2, k3, k4, k5, k6, k7, k8 = jax.random.split(key, 8)

    x = jax.random.normal(k1, (B, C_in, H, W), dtype=jnp.float32)
    gating = jax.random.normal(k2, (B, C_g, H2, W2), dtype=jnp.float32)

    # deterministic "conv" parameters (1x1 kernels squeezed to matrices)
    wt = 0.3 * jax.random.normal(k3, (C_in, C_in), dtype=jnp.float32)   # theta_x (out, in)
    bt = 0.1 * jax.random.normal(k4, (C_in,), dtype=jnp.float32)
    wp = 0.3 * jax.random.normal(k5, (C_in, C_g), dtype=jnp.float32)    # phi_g (out, in)
    bp = 0.1 * jax.random.normal(k6, (C_in,), dtype=jnp.float32)
    wpsi = 0.3 * jax.random.normal(k7, (C_in,), dtype=jnp.float32)      # psi (1, in)
    bpsi = 0.1 * jax.random.normal(k8, (), dtype=jnp.float32)

    y = attention_block(x, gating, (wt, bt, wp, bp, wpsi, bpsi))
    y = jax.block_until_ready(y)

    y_ref = reference_forward(np.asarray(x), np.asarray(gating),
                              np.asarray(wt), np.asarray(bt),
                              np.asarray(wp), np.asarray(bp),
                              np.asarray(wpsi), float(bpsi))
    np.testing.assert_allclose(np.asarray(y), y_ref, rtol=1e-4, atol=2e-5)

    print("KERNEL_OK")
</pallas_src>

<mosaic_0001>
module attributes {stable_mosaic.version = 11 : i64} {
  func.func @attention_gate_kernel(%arg0: i32, %arg1: i32, %arg2: memref<1x12x64xf32, #tpu.memory_space<vmem>>, %arg3: memref<1x4x256xf32, #tpu.memory_space<vmem>>, %arg4: memref<4x12xf32, #tpu.memory_space<vmem>>, %arg5: memref<4x1xf32, #tpu.memory_space<vmem>>, %arg6: memref<4x1xf32, #tpu.memory_space<vmem>>, %arg7: memref<1x1xf32, #tpu.memory_space<vmem>>, %arg8: memref<16x8xf32, #tpu.memory_space<vmem>>, %arg9: memref<8x16xf32, #tpu.memory_space<vmem>>, %arg10: memref<1x4x256xf32, #tpu.memory_space<vmem>>, %arg11: memref<8x8xf32, #tpu.memory_space<vmem>>, %arg12: memref<1x256xf32, #tpu.memory_space<vmem>>) attributes {dimension_semantics = [#tpu.dimension_semantics<parallel>, #tpu.dimension_semantics<arbitrary>], iteration_bounds = array<i64: 2, 1>, scalar_prefetch = 0 : i64, scratch_operands = 2 : i64, tpu.core_type = #tpu.core_type<tc>, window_params = [{transform_indices = @transform_0, window_bounds = array<i64: 1, 12, 64>}, {transform_indices = @transform_1, window_bounds = array<i64: 1, 4, 256>}, {pipeline_mode = #tpu.pipeline_mode<synchronous>, transform_indices = @transform_2, window_bounds = array<i64: 4, 12>}, {pipeline_mode = #tpu.pipeline_mode<synchronous>, transform_indices = @transform_3, window_bounds = array<i64: 4, 1>}, {pipeline_mode = #tpu.pipeline_mode<synchronous>, transform_indices = @transform_4, window_bounds = array<i64: 4, 1>}, {pipeline_mode = #tpu.pipeline_mode<synchronous>, transform_indices = @transform_5, window_bounds = array<i64: 1, 1>}, {pipeline_mode = #tpu.pipeline_mode<synchronous>, transform_indices = @transform_6, window_bounds = array<i64: 16, 8>}, {pipeline_mode = #tpu.pipeline_mode<synchronous>, transform_indices = @transform_7, window_bounds = array<i64: 8, 16>}, {transform_indices = @transform_8, window_bounds = array<i64: 1, 4, 256>}]} {
    %c0_i32 = arith.constant 0 : i32
    %0 = arith.cmpi eq, %arg1, %c0_i32 : i32
    %1 = arith.extui %0 : i1 to i32
    %c0_i32_0 = arith.constant 0 : i32
    %2 = arith.cmpi ne, %1, %c0_i32_0 : i32
    scf.if %2 {
      %c0_8 = arith.constant 0 : index
      %c0_9 = arith.constant 0 : index
      %c0_10 = arith.constant 0 : index
      %11 = vector.load %arg2[%c0_8, %c0_9, %c0_10] : memref<1x12x64xf32, #tpu.memory_space<vmem>>, vector<1x12x64xf32>
      %12 = vector.shape_cast %11 : vector<1x12x64xf32> to vector<12x64xf32>
      %c0_11 = arith.constant 0 : index
      %c0_12 = arith.constant 0 : index
      %13 = vector.load %arg4[%c0_11, %c0_12] : memref<4x12xf32, #tpu.memory_space<vmem>>, vector<4x12xf32>
      %cst = arith.constant dense<0.000000e+00> : vector<4x64xf32>
      %14 = tpu.matmul %13, %12, %cst {dimension_numbers = #tpu.dot_dimension_numbers<[1], [0], [0], [1], [0, 0, 1, 1], [], []>} : vector<4x12xf32>, vector<12x64xf32>, vector<4x64xf32> -> vector<4x64xf32>
      %c0_13 = arith.constant 0 : index
      %c0_14 = arith.constant 0 : index
      %15 = vector.load %arg5[%c0_13, %c0_14] : memref<4x1xf32, #tpu.memory_space<vmem>>, vector<4x1xf32>
      %16 = vector.broadcast %15 : vector<4x1xf32> to vector<4x64xf32>
      %17 = arith.addf %14, %16 : vector<4x64xf32>
      %cst_15 = arith.constant 0.000000e+00 : f32
      %18 = vector.broadcast %cst_15 : f32 to vector<4x64xf32>
      %19 = arith.maximumf %17, %18 : vector<4x64xf32>
      %c0_16 = arith.constant 0 : index
      %c0_17 = arith.constant 0 : index
      %20 = vector.load %arg6[%c0_16, %c0_17] : memref<4x1xf32, #tpu.memory_space<vmem>>, vector<4x1xf32>
      %21 = vector.broadcast %20 : vector<4x1xf32> to vector<4x64xf32>
      %22 = arith.mulf %19, %21 : vector<4x64xf32>
      %cst_18 = arith.constant dense<0.000000e+00> : vector<64xf32>
      %23 = vector.multi_reduction <add>, %22, %cst_18 [0] : vector<4x64xf32> to vector<64xf32>
      %24 = vector.shape_cast %23 : vector<64xf32> to vector<1x64xf32>
      %c0_19 = arith.constant 0 : index
      %c0_20 = arith.constant 0 : index
      %25 = vector.load %arg7[%c0_19, %c0_20] : memref<1x1xf32, #tpu.memory_space<vmem>>, vector<1x1xf32>
      %26 = vector.broadcast %25 : vector<1x1xf32> to vector<1x64xf32>
      %27 = arith.addf %24, %26 : vector<1x64xf32>
      %28 = arith.negf %27 : vector<1x64xf32>
      %29 = math.exp %28 : vector<1x64xf32>
      %cst_21 = arith.constant 1.000000e+00 : f32
      %30 = vector.broadcast %cst_21 : f32 to vector<1x64xf32>
      %31 = arith.addf %30, %29 : vector<1x64xf32>
      %32 = arith.divf %30, %31 : vector<1x64xf32>
      %33 = vector.extract_strided_slice %32 {offsets = [0, 0], sizes = [1, 8], strides = [1, 1]} : vector<1x64xf32> to vector<1x8xf32>
      %c0_22 = arith.constant 0 : index
      %c0_23 = arith.constant 0 : index
      %34 = vector.load %arg11[%c0_22, %c0_23] : memref<8x8xf32, #tpu.memory_space<vmem>>, vector<1x8xf32>
      tpu.vector_store %arg11[%c0_22, %c0_23], %33 {strides = array<i32>} : memref<8x8xf32, #tpu.memory_space<vmem>>, vector<1x8xf32>,
      %35 = vector.extract_strided_slice %32 {offsets = [0, 8], sizes = [1, 8], strides = [1, 1]} : vector<1x64xf32> to vector<1x8xf32>
      %c1 = arith.constant 1 : index
      %c0_24 = arith.constant 0 : index
      %36 = vector.load %arg11[%c1, %c0_24] : memref<8x8xf32, #tpu.memory_space<vmem>>, vector<1x8xf32>
      tpu.vector_store %arg11[%c1, %c0_24], %35 {strides = array<i32>} : memref<8x8xf32, #tpu.memory_space<vmem>>, vector<1x8xf32>,
      %37 = vector.extract_strided_slice %32 {offsets = [0, 16], sizes = [1, 8], strides = [1, 1]} : vector<1x64xf32> to vector<1x8xf32>
      %c2 = arith.constant 2 : index
      %c0_25 = arith.constant 0 : index
      %38 = vector.load %arg11[%c2, %c0_25] : memref<8x8xf32, #tpu.memory_space<vmem>>, vector<1x8xf32>
      tpu.vector_store %arg11[%c2, %c0_25], %37 {strides = array<i32>} : memref<8x8xf32, #tpu.memory_space<vmem>>, vector<1x8xf32>,
      %39 = vector.extract_strided_slice %32 {offsets = [0, 24], sizes = [1, 8], strides = [1, 1]} : vector<1x64xf32> to vector<1x8xf32>
      %c3 = arith.constant 3 : index
      %c0_26 = arith.constant 0 : index
      %40 = vector.load %arg11[%c3, %c0_26] : memref<8x8xf32, #tpu.memory_space<vmem>>, vector<1x8xf32>
      tpu.vector_store %arg11[%c3, %c0_26], %39 {strides = array<i32>} : memref<8x8xf32, #tpu.memory_space<vmem>>, vector<1x8xf32>,
      %41 = vector.extract_strided_slice %32 {offsets = [0, 32], sizes = [1, 8], strides = [1, 1]} : vector<1x64xf32> to vector<1x8xf32>
      %c4 = arith.constant 4 : index
      %c0_27 = arith.constant 0 : index
      %42 = vector.load %arg11[%c4, %c0_27] : memref<8x8xf32, #tpu.memory_space<vmem>>, vector<1x8xf32>
      tpu.vector_store %arg11[%c4, %c0_27], %41 {strides = array<i32>} : memref<8x8xf32, #tpu.memory_space<vmem>>, vector<1x8xf32>,
      %43 = vector.extract_strided_slice %32 {offsets = [0, 40], sizes = [1, 8], strides = [1, 1]} : vector<1x64xf32> to vector<1x8xf32>
      %c5 = arith.constant 5 : index
      %c0_28 = arith.constant 0 : index
      %44 = vector.load %arg11[%c5, %c0_28] : memref<8x8xf32, #tpu.memory_space<vmem>>, vector<1x8xf32>
      tpu.vector_store %arg11[%c5, %c0_28], %43 {strides = array<i32>} : memref<8x8xf32, #tpu.memory_space<vmem>>, vector<1x8xf32>,
      %45 = vector.extract_strided_slice %32 {offsets = [0, 48], sizes = [1, 8], strides = [1, 1]} : vector<1x64xf32> to vector<1x8xf32>
      %c6 = arith.constant 6 : index
      %c0_29 = arith.constant 0 : index
      %46 = vector.load %arg11[%c6, %c0_29] : memref<8x8xf32, #tpu.memory_space<vmem>>, vector<1x8xf32>
      tpu.vector_store %arg11[%c6, %c0_29], %45 {strides = array<i32>} : memref<8x8xf32, #tpu.memory_space<vmem>>, vector<1x8xf32>,
      %47 = vector.extract_strided_slice %32 {offsets = [0, 56], sizes = [1, 8], strides = [1, 1]} : vector<1x64xf32> to vector<1x8xf32>
      %c7 = arith.constant 7 : index
      %c0_30 = arith.constant 0 : index
      %48 = vector.load %arg11[%c7, %c0_30] : memref<8x8xf32, #tpu.memory_space<vmem>>, vector<1x8xf32>
      tpu.vector_store %arg11[%c7, %c0_30], %47 {strides = array<i32>} : memref<8x8xf32, #tpu.memory_space<vmem>>, vector<1x8xf32>,
      %c0_31 = arith.constant 0 : index
      %c0_32 = arith.constant 0 : index
      %49 = vector.load %arg11[%c0_31, %c0_32] : memref<8x8xf32, #tpu.memory_space<vmem>>, vector<8x8xf32>
      %c0_33 = arith.constant 0 : index
      %c0_34 = arith.constant 0 : index
      %50 = vector.load %arg9[%c0_33, %c0_34] : memref<8x16xf32, #tpu.memory_space<vmem>>, vector<8x16xf32>
      %cst_35 = arith.constant dense<0.000000e+00> : vector<8x16xf32>
      %51 = tpu.matmul %49, %50, %cst_35 {dimension_numbers = #tpu.dot_dimension_numbers<[1], [0], [0], [1], [0, 0, 1, 1], [], []>} : vector<8x8xf32>, vector<8x16xf32>, vector<8x16xf32> -> vector<8x16xf32>
      %c0_36 = arith.constant 0 : index
      %c0_37 = arith.constant 0 : index
      %52 = vector.load %arg8[%c0_36, %c0_37] : memref<16x8xf32, #tpu.memory_space<vmem>>, vector<16x8xf32>
      %cst_38 = arith.constant dense<0.000000e+00> : vector<16x16xf32>
      %53 = tpu.matmul %52, %51, %cst_38 {dimension_numbers = #tpu.dot_dimension_numbers<[1], [0], [0], [1], [0, 0, 1, 1], [], []>} : vector<16x8xf32>, vector<8x16xf32>, vector<16x16xf32> -> vector<16x16xf32>
      %54 = vector.extract_strided_slice %53 {offsets = [0, 0], sizes = [1, 16], strides = [1, 1]} : vector<16x16xf32> to vector<1x16xf32>
      %c0_39 = arith.constant 0 : index
      %c0_40 = arith.constant 0 : index
      %55 = vector.load %arg12[%c0_39, %c0_40] : memref<1x256xf32, #tpu.memory_space<vmem>>, vector<1x16xf32>
      tpu.vector_store %arg12[%c0_39, %c0_40], %54 {strides = array<i32>} : memref<1x256xf32, #tpu.memory_space<vmem>>, vector<1x16xf32>,
      %56 = vector.extract_strided_slice %53 {offsets = [1, 0], sizes = [1, 16], strides = [1, 1]} : vector<16x16xf32> to vector<1x16xf32>
      %c0_41 = arith.constant 0 : index
      %c16 = arith.constant 16 : index
      %57 = vector.load %arg12[%c0_41, %c16] : memref<1x256xf32, #tpu.memory_space<vmem>>, vector<1x16xf32>
      tpu.vector_store %arg12[%c0_41, %c16], %56 {strides = array<i32>} : memref<1x256xf32, #tpu.memory_space<vmem>>, vector<1x16xf32>,
      %58 = vector.extract_strided_slice %53 {offsets = [2, 0], sizes = [1, 16], strides = [1, 1]} : vector<16x16xf32> to vector<1x16xf32>
      %c0_42 = arith.constant 0 : index
      %c32 = arith.constant 32 : index
      %59 = vector.load %arg12[%c0_42, %c32] : memref<1x256xf32, #tpu.memory_space<vmem>>, vector<1x16xf32>
      tpu.vector_store %arg12[%c0_42, %c32], %58 {strides = array<i32>} : memref<1x256xf32, #tpu.memory_space<vmem>>, vector<1x16xf32>,
      %60 = vector.extract_strided_slice %53 {offsets = [3, 0], sizes = [1, 16], strides = [1, 1]} : vector<16x16xf32> to vector<1x16xf32>
      %c0_43 = arith.constant 0 : index
      %c48 = arith.constant 48 : index
      %61 = vector.load %arg12[%c0_43, %c48] : memref<1x256xf32, #tpu.memory_space<vmem>>, vector<1x16xf32>
      tpu.vector_store %arg12[%c0_43, %c48], %60 {strides = array<i32>} : memref<1x256xf32, #tpu.memory_space<vmem>>, vector<1x16xf32>,
      %62 = vector.extract_strided_slice %53 {offsets = [4, 0], sizes = [1, 16], strides = [1, 1]} : vector<16x16xf32> to vector<1x16xf32>
      %c0_44 = arith.constant 0 : index
      %c64 = arith.constant 64 : index
      %63 = vector.load %arg12[%c0_44, %c64] : memref<1x256xf32, #tpu.memory_space<vmem>>, vector<1x16xf32>
      tpu.vector_store %arg12[%c0_44, %c64], %62 {strides = array<i32>} : memref<1x256xf32, #tpu.memory_space<vmem>>, vector<1x16xf32>,
      %64 = vector.extract_strided_slice %53 {offsets = [5, 0], sizes = [1, 16], strides = [1, 1]} : vector<16x16xf32> to vector<1x16xf32>
      %c0_45 = arith.constant 0 : index
      %c80 = arith.constant 80 : index
      %65 = vector.load %arg12[%c0_45, %c80] : memref<1x256xf32, #tpu.memory_space<vmem>>, vector<1x16xf32>
      tpu.vector_store %arg12[%c0_45, %c80], %64 {strides = array<i32>} : memref<1x256xf32, #tpu.memory_space<vmem>>, vector<1x16xf32>,
      %66 = vector.extract_strided_slice %53 {offsets = [6, 0], sizes = [1, 16], strides = [1, 1]} : vector<16x16xf32> to vector<1x16xf32>
      %c0_46 = arith.constant 0 : index
      %c96 = arith.constant 96 : index
      %67 = vector.load %arg12[%c0_46, %c96] : memref<1x256xf32, #tpu.memory_space<vmem>>, vector<1x16xf32>
      tpu.vector_store %arg12[%c0_46, %c96], %66 {strides = array<i32>} : memref<1x256xf32, #tpu.memory_space<vmem>>, vector<1x16xf32>,
      %68 = vector.extract_strided_slice %53 {offsets = [7, 0], sizes = [1, 16], strides = [1, 1]} : vector<16x16xf32> to vector<1x16xf32>
      %c0_47 = arith.constant 0 : index
      %c112 = arith.constant 112 : index
      %69 = vector.load %arg12[%c0_47, %c112] : memref<1x256xf32, #tpu.memory_space<vmem>>, vector<1x16xf32>
      tpu.vector_store %arg12[%c0_47, %c112], %68 {strides = array<i32>} : memref<1x256xf32, #tpu.memory_space<vmem>>, vector<1x16xf32>,
      %70 = vector.extract_strided_slice %53 {offsets = [8, 0], sizes = [1, 16], strides = [1, 1]} : vector<16x16xf32> to vector<1x16xf32>
      %c0_48 = arith.constant 0 : index
      %c128 = arith.constant 128 : index
      %71 = vector.load %arg12[%c0_48, %c128] : memref<1x256xf32, #tpu.memory_space<vmem>>, vector<1x16xf32>
      tpu.vector_store %arg12[%c0_48, %c128], %70 {strides = array<i32>} : memref<1x256xf32, #tpu.memory_space<vmem>>, vector<1x16xf32>,
      %72 = vector.extract_strided_slice %53 {offsets = [9, 0], sizes = [1, 16], strides = [1, 1]} : vector<16x16xf32> to vector<1x16xf32>
      %c0_49 = arith.constant 0 : index
      %c144 = arith.constant 144 : index
      %73 = vector.load %arg12[%c0_49, %c144] : memref<1x256xf32, #tpu.memory_space<vmem>>, vector<1x16xf32>
      tpu.vector_store %arg12[%c0_49, %c144], %72 {strides = array<i32>} : memref<1x256xf32, #tpu.memory_space<vmem>>, vector<1x16xf32>,
      %74 = vector.extract_strided_slice %53 {offsets = [10, 0], sizes = [1, 16], strides = [1, 1]} : vector<16x16xf32> to vector<1x16xf32>
      %c0_50 = arith.constant 0 : index
      %c160 = arith.constant 160 : index
      %75 = vector.load %arg12[%c0_50, %c160] : memref<1x256xf32, #tpu.memory_space<vmem>>, vector<1x16xf32>
      tpu.vector_store %arg12[%c0_50, %c160], %74 {strides = array<i32>} : memref<1x256xf32, #tpu.memory_space<vmem>>, vector<1x16xf32>,
      %76 = vector.extract_strided_slice %53 {offsets = [11, 0], sizes = [1, 16], strides = [1, 1]} : vector<16x16xf32> to vector<1x16xf32>
      %c0_51 = arith.constant 0 : index
      %c176 = arith.constant 176 : index
      %77 = vector.load %arg12[%c0_51, %c176] : memref<1x256xf32, #tpu.memory_space<vmem>>, vector<1x16xf32>
      tpu.vector_store %arg12[%c0_51, %c176], %76 {strides = array<i32>} : memref<1x256xf32, #tpu.memory_space<vmem>>, vector<1x16xf32>,
      %78 = vector.extract_strided_slice %53 {offsets = [12, 0], sizes = [1, 16], strides = [1, 1]} : vector<16x16xf32> to vector<1x16xf32>
      %c0_52 = arith.constant 0 : index
      %c192 = arith.constant 192 : index
      %79 = vector.load %arg12[%c0_52, %c192] : memref<1x256xf32, #tpu.memory_space<vmem>>, vector<1x16xf32>
      tpu.vector_store %arg12[%c0_52, %c192], %78 {strides = array<i32>} : memref<1x256xf32, #tpu.memory_space<vmem>>, vector<1x16xf32>,
      %80 = vector.extract_strided_slice %53 {offsets = [13, 0], sizes = [1, 16], strides = [1, 1]} : vector<16x16xf32> to vector<1x16xf32>
      %c0_53 = arith.constant 0 : index
      %c208 = arith.constant 208 : index
      %81 = vector.load %arg12[%c0_53, %c208] : memref<1x256xf32, #tpu.memory_space<vmem>>, vector<1x16xf32>
      tpu.vector_store %arg12[%c0_53, %c208], %80 {strides = array<i32>} : memref<1x256xf32, #tpu.memory_space<vmem>>, vector<1x16xf32>,
      %82 = vector.extract_strided_slice %53 {offsets = [14, 0], sizes = [1, 16], strides = [1, 1]} : vector<16x16xf32> to vector<1x16xf32>
      %c0_54 = arith.constant 0 : index
      %c224 = arith.constant 224 : index
      %83 = vector.load %arg12[%c0_54, %c224] : memref<1x256xf32, #tpu.memory_space<vmem>>, vector<1x16xf32>
      tpu.vector_store %arg12[%c0_54, %c224], %82 {strides = array<i32>} : memref<1x256xf32, #tpu.memory_space<vmem>>, vector<1x16xf32>,
      %84 = vector.extract_strided_slice %53 {offsets = [15, 0], sizes = [1, 16], strides = [1, 1]} : vector<16x16xf32> to vector<1x16xf32>
      %c0_55 = arith.constant 0 : index
      %c240 = arith.constant 240 : index
      %85 = vector.load %arg12[%c0_55, %c240] : memref<1x256xf32, #tpu.memory_space<vmem>>, vector<1x16xf32>
      tpu.vector_store %arg12[%c0_55, %c240], %84 {strides = array<i32>} : memref<1x256xf32, #tpu.memory_space<vmem>>, vector<1x16xf32>,
    } else {
    }
    %c0 = arith.constant 0 : index
    %c0_1 = arith.constant 0 : index
    %3 = vector.load %arg12[%c0, %c0_1] : memref<1x256xf32, #tpu.memory_space<vmem>>, vector<1x256xf32>
    %c0_2 = arith.constant 0 : index
    %c0_3 = arith.constant 0 : index
    %c0_4 = arith.constant 0 : index
    %4 = vector.load %arg3[%c0_2, %c0_3, %c0_4] : memref<1x4x256xf32, #tpu.memory_space<vmem>>, vector<1x4x256xf32>
    %5 = vector.shape_cast %4 : vector<1x4x256xf32> to vector<4x256xf32>
    %6 = vector.broadcast %3 : vector<1x256xf32> to vector<4x256xf32>
    %7 = arith.mulf %6, %5 : vector<4x256xf32>
    %c0_5 = arith.constant 0 : index
    %c0_6 = arith.constant 0 : index
    %c0_7 = arith.constant 0 : index
    %8 = vector.load %arg10[%c0_5, %c0_6, %c0_7] : memref<1x4x256xf32, #tpu.memory_space<vmem>>, vector<1x4x256xf32>
    %9 = vector.shape_cast %8 : vector<1x4x256xf32> to vector<4x256xf32>
    %10 = vector.shape_cast %7 : vector<4x256xf32> to vector<1x4x256xf32>
    tpu.vector_store %arg10[%c0_5, %c0_6, %c0_7], %10 {strides = array<i32>} : memref<1x4x256xf32, #tpu.memory_space<vmem>>, vector<1x4x256xf32>,
    return
  }
  func.func @transform_0(%arg0: i32, %arg1: i32) -> (i32, i32, i32) {
    %c0_i32 = arith.constant 0 : i32
    %c0_i32_0 = arith.constant 0 : i32
    %c0_i32_1 = arith.constant 0 : i32
    return %arg0, %c0_i32, %c0_i32_0 : i32, i32, i32
  }
  func.func @transform_1(%arg0: i32, %arg1: i32) -> (i32, i32, i32) {
    %c0_i32 = arith.constant 0 : i32
    %c0_i32_0 = arith.constant 0 : i32
    return %arg0, %arg1, %c0_i32 : i32, i32, i32
  }
  func.func @transform_2(%arg0: i32, %arg1: i32) -> (i32, i32) {
    %c0_i32 = arith.constant 0 : i32
    %c0_i32_0 = arith.constant 0 : i32
    %c0_i32_1 = arith.constant 0 : i32
    return %c0_i32, %c0_i32_0 : i32, i32
  }
  func.func @transform_3(%arg0: i32, %arg1: i32) -> (i32, i32) {
    %c0_i32 = arith.constant 0 : i32
    %c0_i32_0 = arith.constant 0 : i32
    %c0_i32_1 = arith.constant 0 : i32
    return %c0_i32, %c0_i32_0 : i32, i32
  }
  func.func @transform_4(%arg0: i32, %arg1: i32) -> (i32, i32) {
    %c0_i32 = arith.constant 0 : i32
    %c0_i32_0 = arith.constant 0 : i32
    %c0_i32_1 = arith.constant 0 : i32
    return %c0_i32, %c0_i32_0 : i32, i32
  }
  func.func @transform_5(%arg0: i32, %arg1: i32) -> (i32, i32) {
    %c0_i32 = arith.constant 0 : i32
    %c0_i32_0 = arith.constant 0 : i32
    %c0_i32_1 = arith.constant 0 : i32
    return %c0_i32, %c0_i32_0 : i32, i32
  }
  func.func @transform_6(%arg0: i32, %arg1: i32) -> (i32, i32) {
    %c0_i32 = arith.constant 0 : i32
    %c0_i32_0 = arith.constant 0 : i32
    %c0_i32_1 = arith.constant 0 : i32
    return %c0_i32, %c0_i32_0 : i32, i32
  }
  func.func @transform_7(%arg0: i32, %arg1: i32) -> (i32, i32) {
    %c0_i32 = arith.constant 0 : i32
    %c0_i32_0 = arith.constant 0 : i32
    %c0_i32_1 = arith.constant 0 : i32
    return %c0_i32, %c0_i32_0 : i32, i32
  }
  func.func @transform_8(%arg0: i32, %arg1: i32) -> (i32, i32, i32) {
    %c0_i32 = arith.constant 0 : i32
    %c0_i32_0 = arith.constant 0 : i32
    return %arg0, %arg1, %c0_i32 : i32, i32, i32
  }
}

</mosaic_0001>

<llo_original>
// kernel: tpu_custom_call.1
$region0: #{tpu_custom_call.1}
  #allocation0 [shape = 'u32[]', space=smem, size = 0x4, offset = 0x4, fixed_abs, tag = 'smem constant byte address 0x4 - core index']
  #allocation1 [shape = 'u32[144,128]{1,0:T(1,128)}', space=vmem, size = 0x12000, scoped, tag = 'internal scratch']
  #allocation2 [shape = 'f32[8,8]{1,0:T(8,128)}', space=vmem, size = 0x1000, scoped, tag = 'scratch operand']
  #allocation3 [shape = 'f32[1,256]{1,0:T(1,128)}', space=vmem, size = 0x400, scoped, tag = 'scratch operand']
  #allocation4 [shape = 'f32[1,1]{1,0:T(1,128)S(1)}', space=vmem, size = 0x200, scoped, tag = 'scoped memory for tpu_custom_call.1']
  %s0 = inlined_call_operand.vmem [shape: f32[2,12,64], index: 0, kind: input, shape index: {}]
  %s1 = inlined_call_operand.vmem [shape: f32[2,4,256], index: 1, kind: input, shape index: {}]
  %s2 = inlined_call_operand.vmem [shape: f32[4,12], index: 2, kind: input, shape index: {}]
  %s3 = inlined_call_operand.vmem [shape: f32[4,1], index: 3, kind: input, shape index: {}]
  %s4 = inlined_call_operand.vmem [shape: f32[4,1], index: 4, kind: input, shape index: {}]
  %s5 = inlined_call_operand.<no memory space> [shape: f32[1,1], index: 5, kind: input, shape index: {}]
  %s6 = inlined_call_operand.vmem [shape: f32[16,8], index: 6, kind: input, shape index: {}]
  %s7 = inlined_call_operand.vmem [shape: f32[8,16], index: 7, kind: input, shape index: {}]
  %s8 = inlined_call_operand.hbm [shape: f32[2,4,256], index: 8, kind: output, shape index: {}]
  %s9 = sld [smem:[#allocation0]]
  $region69: #{tpu_custom_call.1} parent=0
    _
  %s11 = ssub.s32 1, %s9
  %s12 = scalar_select 0, %s11, %s9
  %v13 = vstv %s5
  %14 = vst [vmem:[#allocation4] sm:$0x1] %v13
  $region1: #{tpu_custom_call.1} parent=0
    #allocation5 [shape = 'u8[8192]{0}', space=vmem, size = 0x2000, scoped, tag = 'output window, operand 0']
    #allocation6 [shape = 's32[2]{0}', space=sflag, size = 0x8, scoped, tag = 'scoped memory for tpu_custom_call.1']
    %15 = vsyncpa [#allocation6], 0
    %s16 = scalar_lea.sflag [#allocation6], 1
    %17 = vsyncpa %s16, 0
    loop: start=0, step=1, limit=4
    $region2: #{tpu_custom_call.1} parent=1 // loop_pre_header
      _
    $region3: #{tpu_custom_call.1} parent=1 // loop_header
      %s19 = sphi 0, %s23
      %p20 = scmp.ge.s32.totalorder %s19, 4
      %s26 = sphi 0, %s38
      %s27 = sphi 0, %s34
      %s28 = sphi 0, %s26
      %s29 = sphi 0, %s27
      %s30 = sphi 0, %s28
      %s31 = sphi 0, %s29
      %s41 = sphi 0, %s43
      %s44 = sphi 0, %s41
      %s45 = sphi 0, %s44
      %s61 = sphi 0, %s45
      %s69 = sphi 0, %s71
      %s72 = sphi 0, %s69
      %s73 = sphi 0, %s72
      %s89 = sphi 0, %s73
      %s93 = sphi 0, %s93
      %s95 = sphi 0, %s93
      %s96 = sphi 0, %s95
      %s110 = sphi 0, %s96
      %s114 = sphi 0, %s114
      %s116 = sphi 0, %s114
      %s117 = sphi 0, %s116
      %s131 = sphi 0, %s117
      %s135 = sphi 0, %s135
      %s137 = sphi 0, %s135
      %s138 = sphi 0, %s137
      %s152 = sphi 0, %s138
      %s156 = sphi 0, %s156
      %s158 = sphi 0, %s156
      %s159 = sphi 0, %s158
      %s173 = sphi 0, %s159
      %s177 = sphi 0, %s177
      %s179 = sphi 0, %s177
      %s180 = sphi 0, %s179
      %s194 = sphi 0, %s180
      %s198 = sphi 0, %s198
      %s200 = sphi 0, %s198
      %s201 = sphi 0, %s200
      %s215 = sphi 0, %s201
      %s223 = sphi 0, %s225
      %s226 = sphi 0, %s223
      %s227 = sphi 0, %s226
      %s243 = sphi 0, %s227
    $region4: #{tpu_custom_call.1} parent=1 // loop_header_branch
      %22 = sbr.rel (%p20) target = $region8
    $region5: #{tpu_custom_call.1} parent=1 // loop_body
      %s24 = ssub.s32 %s19, 1
      %s25 = ssub.s32 %s19, 2
      %s32 = sadd.s32 1, %s27
      %p33 = scmp.ge.s32.totalorder %s32, 1
      %s34 = scalar_select %p33, 0, %s32
      %s35 = sadd.s32 1, %s26
      %s36 = scalar_select %p33, %s35, %s26
      %p37 = scmp.ge.s32.totalorder %s36, 2
      %s38 = scalar_select %p37, 0, %s36
      %s39 = ssub.s32 %s26, %s38
      %p40 = scmp.eq.s32.totalorder %s39, 0
      %s42 = sadd.s32 %s41, 1
      %s43 = scalar_select %p40, %s41, %s42
      %p46 = pneg %p40
      %p47 = scmp.eq.s32.totalorder %s19, 1
      %p48 = por %p46, %p47
      %p49 = scmp.ne.s32.totalorder %s41, %s44
      %p50 = scmp.eq.s32.totalorder %s19, 0
      %p51 = por %p49, %p50
      %p52 = scmp.ne.s32.totalorder %s41, %s44
      %p53 = scmp.eq.s32.totalorder %s24, 1
      %p54 = por %p52, %p53
      %p55 = scmp.ne.s32.totalorder %s44, %s45
      %p56 = scmp.eq.s32.totalorder %s24, 0
      %p57 = por %p55, %p56
      %p58 = scmp.ne.s32.totalorder %s44, %s45
      %p59 = scmp.eq.s32.totalorder %s25, 1
      %p60 = por %p58, %p59
      %p62 = scmp.ne.s32.totalorder %s45, %s61
      %p63 = scmp.eq.s32.totalorder %s25, 0
      %p64 = por %p62, %p63
      %s65 = ssub.s32 %s26, %s38
      %s66 = ssub.s32 %s27, %s34
      %s67 = sor.u32 %s65, %s66
      %p68 = scmp.eq.s32.totalorder %s67, 0
      %s70 = sadd.s32 %s69, 1
      %s71 = scalar_select %p68, %s69, %s70
      %p74 = pneg %p68
      %p75 = scmp.eq.s32.totalorder %s19, 1
      %p76 = por %p74, %p75
      %p77 = scmp.ne.s32.totalorder %s69, %s72
      %p78 = scmp.eq.s32.totalorder %s19, 0
      %p79 = por %p77, %p78
      %p80 = scmp.ne.s32.totalorder %s69, %s72
      %p81 = scmp.eq.s32.totalorder %s24, 1
      %p82 = por %p80, %p81
      %p83 = scmp.ne.s32.totalorder %s72, %s73
      %p84 = scmp.eq.s32.totalorder %s24, 0
      %p85 = por %p83, %p84
      %p86 = scmp.ne.s32.totalorder %s72, %s73
      %p87 = scmp.eq.s32.totalorder %s25, 1
      %p88 = por %p86, %p87
      %p90 = scmp.ne.s32.totalorder %s73, %s89
      %p91 = scmp.eq.s32.totalorder %s25, 0
      %p92 = por %p90, %p91
      %s94 = sadd.s32 %s93, 1
      %p97 = scmp.eq.s32.totalorder %s19, 1
      %p98 = scmp.ne.s32.totalorder %s93, %s95
      %p99 = scmp.eq.s32.totalorder %s19, 0
      %p100 = por %p98, %p99
      %p101 = scmp.ne.s32.totalorder %s93, %s95
      %p102 = scmp.eq.s32.totalorder %s24, 1
      %p103 = por %p101, %p102
      %p104 = scmp.ne.s32.totalorder %s95, %s96
      %p105 = scmp.eq.s32.totalorder %s24, 0
      %p106 = por %p104, %p105
      %p107 = scmp.ne.s32.totalorder %s95, %s96
      %p108 = scmp.eq.s32.totalorder %s25, 1
      %p109 = por %p107, %p108
      %p111 = scmp.ne.s32.totalorder %s96, %s110
      %p112 = scmp.eq.s32.totalorder %s25, 0
      %p113 = por %p111, %p112
      %s115 = sadd.s32 %s114, 1
      %p118 = scmp.eq.s32.totalorder %s19, 1
      %p119 = scmp.ne.s32.totalorder %s114, %s116
      %p120 = scmp.eq.s32.totalorder %s19, 0
      %p121 = por %p119, %p120
      %p122 = scmp.ne.s32.totalorder %s114, %s116
      %p123 = scmp.eq.s32.totalorder %s24, 1
      %p124 = por %p122, %p123
      %p125 = scmp.ne.s32.totalorder %s116, %s117
      %p126 = scmp.eq.s32.totalorder %s24, 0
      %p127 = por %p125, %p126
      %p128 = scmp.ne.s32.totalorder %s116, %s117
      %p129 = scmp.eq.s32.totalorder %s25, 1
      %p130 = por %p128, %p129
      %p132 = scmp.ne.s32.totalorder %s117, %s131
      %p133 = scmp.eq.s32.totalorder %s25, 0
      %p134 = por %p132, %p133
      %s136 = sadd.s32 %s135, 1
      %p139 = scmp.eq.s32.totalorder %s19, 1
      %p140 = scmp.ne.s32.totalorder %s135, %s137
      %p141 = scmp.eq.s32.totalorder %s19, 0
      %p142 = por %p140, %p141
      %p143 = scmp.ne.s32.totalorder %s135, %s137
      %p144 = scmp.eq.s32.totalorder %s24, 1
      %p145 = por %p143, %p144
      %p146 = scmp.ne.s32.totalorder %s137, %s138
      %p147 = scmp.eq.s32.totalorder %s24, 0
      %p148 = por %p146, %p147
      %p149 = scmp.ne.s32.totalorder %s137, %s138
      %p150 = scmp.eq.s32.totalorder %s25, 1
      %p151 = por %p149, %p150
      %p153 = scmp.ne.s32.totalorder %s138, %s152
      %p154 = scmp.eq.s32.totalorder %s25, 0
      %p155 = por %p153, %p154
      %s157 = sadd.s32 %s156, 1
      %p160 = scmp.eq.s32.totalorder %s19, 1
      %p161 = scmp.ne.s32.totalorder %s156, %s158
      %p162 = scmp.eq.s32.totalorder %s19, 0
      %p163 = por %p161, %p162
      %p164 = scmp.ne.s32.totalorder %s156, %s158
      %p165 = scmp.eq.s32.totalorder %s24, 1
      %p166 = por %p164, %p165
      %p167 = scmp.ne.s32.totalorder %s158, %s159
      %p168 = scmp.eq.s32.totalorder %s24, 0
      %p169 = por %p167, %p168
      %p170 = scmp.ne.s32.totalorder %s158, %s159
      %p171 = scmp.eq.s32.totalorder %s25, 1
      %p172 = por %p170, %p171
      %p174 = scmp.ne.s32.totalorder %s159, %s173
      %p175 = scmp.eq.s32.totalorder %s25, 0
      %p176 = por %p174, %p175
      %s178 = sadd.s32 %s177, 1
      %p181 = scmp.eq.s32.totalorder %s19, 1
      %p182 = scmp.ne.s32.totalorder %s177, %s179
      %p183 = scmp.eq.s32.totalorder %s19, 0
      %p184 = por %p182, %p183
      %p185 = scmp.ne.s32.totalorder %s177, %s179
      %p186 = scmp.eq.s32.totalorder %s24, 1
      %p187 = por %p185, %p186
      %p188 = scmp.ne.s32.totalorder %s179, %s180
      %p189 = scmp.eq.s32.totalorder %s24, 0
      %p190 = por %p188, %p189
      %p191 = scmp.ne.s32.totalorder %s179, %s180
      %p192 = scmp.eq.s32.totalorder %s25, 1
      %p193 = por %p191, %p192
      %p195 = scmp.ne.s32.totalorder %s180, %s194
      %p196 = scmp.eq.s32.totalorder %s25, 0
      %p197 = por %p195, %p196
      %s199 = sadd.s32 %s198, 1
      %p202 = scmp.eq.s32.totalorder %s19, 1
      %p203 = scmp.ne.s32.totalorder %s198, %s200
      %p204 = scmp.eq.s32.totalorder %s19, 0
      %p205 = por %p203, %p204
      %p206 = scmp.ne.s32.totalorder %s198, %s200
      %p207 = scmp.eq.s32.totalorder %s24, 1
      %p208 = por %p206, %p207
      %p209 = scmp.ne.s32.totalorder %s200, %s201
      %p210 = scmp.eq.s32.totalorder %s24, 0
      %p211 = por %p209, %p210
      %p212 = scmp.ne.s32.totalorder %s200, %s201
      %p213 = scmp.eq.s32.totalorder %s25, 1
      %p214 = por %p212, %p213
      %p216 = scmp.ne.s32.totalorder %s201, %s215
      %p217 = scmp.eq.s32.totalorder %s25, 0
      %p218 = por %p216, %p217
      %s219 = ssub.s32 %s26, %s38
      %s220 = ssub.s32 %s27, %s34
      %s221 = sor.u32 %s219, %s220
      %p222 = scmp.eq.s32.totalorder %s221, 0
      %s224 = sadd.s32 %s223, 1
      %s225 = scalar_select %p222, %s223, %s224
      %p228 = pneg %p222
      %p229 = scmp.eq.s32.totalorder %s19, 1
      %p230 = por %p228, %p229
      %p231 = scmp.ne.s32.totalorder %s223, %s226
      %p232 = scmp.eq.s32.totalorder %s19, 0
      %p233 = por %p231, %p232
      %p234 = scmp.ne.s32.totalorder %s223, %s226
      %p235 = scmp.eq.s32.totalorder %s24, 1
      %p236 = por %p234, %p235
      %p237 = scmp.ne.s32.totalorder %s226, %s227
      %p238 = scmp.eq.s32.totalorder %s24, 0
      %p239 = por %p237, %p238
      %p240 = scmp.ne.s32.totalorder %s226, %s227
      %p241 = scmp.eq.s32.totalorder %s25, 1
      %p242 = por %p240, %p241
      %p244 = scmp.ne.s32.totalorder %s227, %s243
      %p245 = scmp.eq.s32.totalorder %s25, 0
      %p246 = por %p244, %p245
      %p247 = scmp.le.s32.totalorder 1, %s19
      %p248 = scmp.lt.s32.totalorder %s19, 3
      %p249 = pnand %p247, %p248
      %p250 = pneg %p249
      // Predicated region
      $region9: #{tpu_custom_call.1} parent=5 // pred_check
        _
      $region10: #{tpu_custom_call.1} parent=5 // pred_check_branch
        %252 = sbr.rel (%p249) target = $region12
      $region11: #{tpu_custom_call.1} parent=5 // pred_region
        %s253 = ssub.s32 %s19, 1
        // Predicated region
        $region13: #{tpu_custom_call.1} parent=11 // pred_check
          %p254 = pneg %p106
        $region14: #{tpu_custom_call.1} parent=11 // pred_check_branch
          %256 = sbr.rel (%p254) target = $region16
        $region15: #{tpu_custom_call.1} parent=11 // pred_region
          _
        $region16: #{tpu_custom_call.1} parent=11 // pred_fallthru
          _
        // Predicated region
        $region17: #{tpu_custom_call.1} parent=11 // pred_check
          %p257 = pneg %p127
        $region18: #{tpu_custom_call.1} parent=11 // pred_check_branch
          %259 = sbr.rel (%p257) target = $region20
        $region19: #{tpu_custom_call.1} parent=11 // pred_region
          _
        $region20: #{tpu_custom_call.1} parent=11 // pred_fallthru
          _
        // Predicated region
        $region21: #{tpu_custom_call.1} parent=11 // pred_check
          %p260 = pneg %p148
        $region22: #{tpu_custom_call.1} parent=11 // pred_check_branch
          %262 = sbr.rel (%p260) target = $region24
        $region23: #{tpu_custom_call.1} parent=11 // pred_region
          _
        $region24: #{tpu_custom_call.1} parent=11 // pred_fallthru
          _
        // Predicated region
        $region25: #{tpu_custom_call.1} parent=11 // pred_check
          %p263 = pneg %p169
        $region26: #{tpu_custom_call.1} parent=11 // pred_check_branch
          %265 = sbr.rel (%p263) target = $region28
        $region27: #{tpu_custom_call.1} parent=11 // pred_region
          _
        $region28: #{tpu_custom_call.1} parent=11 // pred_fallthru
          _
        // Predicated region
        $region29: #{tpu_custom_call.1} parent=11 // pred_check
          %p266 = pneg %p190
        $region30: #{tpu_custom_call.1} parent=11 // pred_check_branch
          %268 = sbr.rel (%p266) target = $region32
        $region31: #{tpu_custom_call.1} parent=11 // pred_region
          _
        $region32: #{tpu_custom_call.1} parent=11 // pred_fallthru
          _
        // Predicated region
        $region33: #{tpu_custom_call.1} parent=11 // pred_check
          %p269 = pneg %p211
        $region34: #{tpu_custom_call.1} parent=11 // pred_check_branch
          %271 = sbr.rel (%p269) target = $region36
        $region35: #{tpu_custom_call.1} parent=11 // pred_region
          _
        $region36: #{tpu_custom_call.1} parent=11 // pred_fallthru
          _
      $region12: #{tpu_custom_call.1} parent=5 // pred_fallthru
        _
      %p272 = scmp.lt.s32.totalorder %s19, 2
      // Predicated region
      $region37: #{tpu_custom_call.1} parent=5 // pred_check
        %p273 = pneg %p272
      $region38: #{tpu_custom_call.1} parent=5 // pred_check_branch
        %275 = sbr.rel (%p273) target = $region40
      $region39: #{tpu_custom_call.1} parent=5 // pred_region
        // Predicated region
        $region41: #{tpu_custom_call.1} parent=39 // pred_check
          %p276 = pneg %p51
        $region42: #{tpu_custom_call.1} parent=39 // pred_check_branch
          %278 = sbr.rel (%p276) target = $region44
        $region43: #{tpu_custom_call.1} parent=39 // pred_region
          %p279 = scmp.lt.s32.totalorder %s26, 1
          %s280 = scalar_select %p279, %s26, 1
          %s281 = smul.addr %s280, 2
          %s282 = smul.addr %s281, 8
          %s283 = scalar_lea.vmem %s0, %s282
        $region44: #{tpu_custom_call.1} parent=39 // pred_fallthru
          _
        // Predicated region
        $region45: #{tpu_custom_call.1} parent=39 // pred_check
          %p284 = pneg %p79
        $region46: #{tpu_custom_call.1} parent=39 // pred_check_branch
          %286 = sbr.rel (%p284) target = $region48
        $region47: #{tpu_custom_call.1} parent=39 // pred_region
          %p287 = scmp.lt.s32.totalorder %s26, 1
          %s288 = scalar_select %p287, %s26, 1
          %p289 = scmp.lt.s32.totalorder %s27, 0
          %s290 = scalar_select %p289, %s27, 0
          %s291 = smul.addr %s290, 2
          %s292 = smul.addr %s288, 2
          %s293 = sadd.s32 %s291, %s292
          %s294 = smul.addr %s293, 4
          %s295 = scalar_lea.vmem %s1, %s294
        $region48: #{tpu_custom_call.1} parent=39 // pred_fallthru
          _
      $region40: #{tpu_custom_call.1} parent=5 // pred_fallthru
        _
      %p296 = scmp.le.s32.totalorder 1, %s19
      %p297 = scmp.lt.s32.totalorder %s19, 3
      %p298 = pnand %p296, %p297
      %p299 = pneg %p298
      // Predicated region
      $region49: #{tpu_custom_call.1} parent=5 // pred_check
        _
      $region50: #{tpu_custom_call.1} parent=5 // pred_check_branch
        %301 = sbr.rel (%p298) target = $region52
      $region51: #{tpu_custom_call.1} parent=5 // pred_region
        %s302 = ssub.s32 %s19, 1
        %p303 = scmp.lt.s32.totalorder %s28, 1
        %s304 = scalar_select %p303, %s28, 1
        %s305 = smul.addr %s304, 2
        %s306 = smul.addr %s305, 8
        %s307 = scalar_lea.vmem %s0, %s306
        %p308 = pneg %p57
        %p309 = pneg %p54
        %p310 = scmp.lt.s32.totalorder %s28, 1
        %s311 = scalar_select %p310, %s28, 1
        %p312 = scmp.lt.s32.totalorder %s29, 0
        %s313 = scalar_select %p312, %s29, 0
        %s314 = smul.addr %s313, 2
        %s315 = smul.addr %s311, 2
        %s316 = sadd.s32 %s314, %s315
        %s317 = smul.addr %s316, 4
        %s318 = scalar_lea.vmem %s1, %s317
        %p319 = pneg %p85
        %p320 = pneg %p82
        %p321 = pneg %p106
        %p322 = pneg %p103
        %p323 = pneg %p127
        %p324 = pneg %p124
        %p325 = pneg %p148
        %p326 = pneg %p145
        %p327 = pneg %p169
        %p328 = pneg %p166
        %p329 = pneg %p190
        %p330 = pneg %p187
        %p331 = pneg %p211
        %p332 = pneg %p208
        %p333 = pneg %p239
        %p334 = pneg %p236
        %s335 = sand.u32 %s226, 1
        %s336 = scalar_lea.sflag [#allocation6], %s335
        %s337 = sand.u32 %s226, 1
        %s338 = smul.addr %s337, 8
        %s339 = scalar_lea.vmem [#allocation5], %s338
        %p340 = scmp.lt.s32.totalorder %s28, 1
        %s341 = scalar_select %p340, %s28, 1
        %s342 = smul.addr %s341, 2
        %s343 = smul.addr %s342, 8
        %s344 = scalar_lea.vmem %s0, %s343
        %p345 = scmp.lt.s32.totalorder %s28, 1
        %s346 = scalar_select %p345, %s28, 1
        %p347 = scmp.lt.s32.totalorder %s29, 0
        %s348 = scalar_select %p347, %s29, 0
        %s349 = smul.addr %s348, 2
        %s350 = smul.addr %s346, 2
        %s351 = sadd.s32 %s349, %s350
        %s352 = smul.addr %s351, 4
        %s353 = scalar_lea.vmem %s1, %s352
        %p354 = scmp.eq.s32.totalorder %s29, 0
        // Predicated region
        $region53: #{tpu_custom_call.1} parent=51 // pred_check
          %p355 = pneg %p354
        $region54: #{tpu_custom_call.1} parent=51 // pred_check_branch
          %357 = sbr.rel (%p355) target = $region56
        $region55: #{tpu_custom_call.1} parent=51 // pred_region
          %v358 = vld [vmem:[%s344] sm:$0xff]
          %v359 = vld [vmem:[%s344 + $0x8] sm:$0xf]
          %v360 = vld [vmem:[%s2] sm:$0xf]
          %v361 = vld [vmem:[%s3] sm:$0xf]
          %363 = vset.pattern.permute.xlu0 0
          %364 = vperm.xlu0 %363, %v361
          %v365 = vpop.permute.xlu0 %364
          %vm367 = vcmask 97280
          %v369 = vsel %vm367, %v360, 0
          %vm371 = vcmask 1043456
          %v373 = vsel %vm371, %v359, 0
          %375 = vmatprep.subr.mxu0 0.0
          %376 = vmatpush1.msra.mxu0 0.0
          %377 = vmatprep.subr.mxu0 0.0
          %378 = vmatpush1.msra.mxu0 0.0
          %379 = vmatprep.subr.mxu0 0.0
          %380 = vmatpush1.msra.mxu0 0.0
          %381 = vmatprep.subr.mxu0 0.0
          %382 = vmatpush1.msra.mxu0 0.0
          %383 = vmatprep.subr.mxu0 0.0
          %384 = vmatpush1.msra.mxu0 0.0
          %385 = vmatprep.subr.mxu0 0.0
          %386 = vmatpush1.msra.mxu0 0.0
          %387 = vmatprep.subr.mxu0 0.0
          %388 = vmatpush1.msra.mxu0 0.0
          %389 = vmatprep.subr.mxu0 0.0
          %390 = vmatpush1.msra.mxu0 0.0
          %391 = vmatprep.subr.mxu0 0.0
          %392 = vmatpush1.msra.mxu0 0.0
          %393 = vmatprep.subr.mxu0 0.0
          %394 = vmatpush1.msra.mxu0 0.0
          %395 = vmatprep.subr.mxu0 0.0
          %396 = vmatpush1.msra.mxu0 0.0
          %397 = vmatprep.subr.mxu0 0.0
          %398 = vmatpush1.msra.mxu0 0.0
          %399 = vmatprep.subr.mxu0 0.0
          %400 = vmatpush1.msra.mxu0 0.0
          %401 = vmatprep.subr.mxu0 0.0
          %402 = vmatpush1.msra.mxu0 0.0
          %403 = vmatprep.subr.mxu0 0.0
          %404 = vmatpush1.msra.mxu0 %v373
          %405 = vmatprep.subr.mxu0 0.0
          %406 = vmatpush1.msra.mxu0 %v358
          %407 = vmatprep.subr.mxu0 0.0
          %408 = vmatpush2.msra.mxu0 0.0
          %409 = vmatprep.subr.mxu0 0.0
          %410 = vmatpush2.msra.mxu0 0.0
          %411 = vmatprep.subr.mxu0 0.0
          %412 = vmatpush2.msra.mxu0 0.0
          %413 = vmatprep.subr.mxu0 0.0
          %414 = vmatpush2.msra.mxu0 0.0
          %415 = vmatprep.subr.mxu0 0.0
          %416 = vmatpush2.msra.mxu0 0.0
          %417 = vmatprep.subr.mxu0 0.0
          %418 = vmatpush2.msra.mxu0 0.0
          %419 = vmatprep.subr.mxu0 0.0
          %420 = vmatpush2.msra.mxu0 0.0
          %421 = vmatprep.subr.mxu0 0.0
          %422 = vmatpush2.msra.mxu0 0.0
          %423 = vmatprep.subr.mxu0 0.0
          %424 = vmatpush2.msra.mxu0 0.0
          %425 = vmatprep.subr.mxu0 0.0
          %426 = vmatpush2.msra.mxu0 0.0
          %427 = vmatprep.subr.mxu0 0.0
          %428 = vmatpush2.msra.mxu0 0.0
          %429 = vmatprep.subr.mxu0 0.0
          %430 = vmatpush2.msra.mxu0 0.0
          %431 = vmatprep.subr.mxu0 0.0
          %432 = vmatpush2.msra.mxu0 0.0
          %433 = vmatprep.subr.mxu0 0.0
          %434 = vmatpush2.msra.mxu0 0.0
          %435 = vmatprep.subr.mxu0 0.0
          %436 = vmatpush2.msra.mxu0 0.0
          %437 = vmatprep.subr.mxu0 0.0
          %438 = vmatpush2.msra.mxu0 0.0
          %439 = vmatprep.mubr.f32.mxu0 0.0
          %440 = vmatmul.mubr.f32.gmra.mxu0 %v369
          %v441 = vpop.f32.mrf.mxu0
          %v442 = vadd.f32 %v365, %v441
          %v443 = vpop.f32.mrf.mxu0
          %444 = vdwg.mxu0
          %v445 = vmax.f32 %v442, 0.0
          %v446 = vld [vmem:[%s4] sm:$0xf]
          %448 = vset.pattern.permute.xlu0 0
          %449 = vperm.xlu0 %448, %v446
          %v450 = vpop.permute.xlu0 %449
          %v452 = vmul.f32 %v445, %v450
          %vm453 = vcmask 519168
          %v454 = vsel %vm453, %v452, 0.0
          %v455 = vrot.slane %v454, 4
          %v456 = vadd.f32 %v454, %v455
          %v457 = vrot.slane %v456, 2
          %v458 = vadd.f32 %v456, %v457
          %v459 = vrot.slane %v458, 1
          %v460 = vadd.f32 %v458, %v459
          %v461 = vld [vmem:[#allocation4] sm:$0x1]
          %463 = vset.pattern.permute.xlu0 0
          %464 = vperm.xlu0 %463, %v461
          %v465 = vpop.permute.xlu0 %464
          %v467 = vlaneseq
          %v468 = vshrl.u32 %v467, 7
          %v469 = vsub.s32 0, %v468
          %v470 = vrot.slane %v465, %v469
          %v471 = vadd.f32 %v460, %v470
          %v472 = vxor.u32 %v471, 2147483648
          %v473 = vmul.f32 %v472, 1.442695
          %v474 = vpow.pop %v473
          %v475 = vadd.f32 %v474, 1.0
          %v476 = vrcp.pop %v475
          %v477 = vmul.f32 1.0, %v476
          %vm478 = vcmask 57344
          %479 = vst.msk [vmem:[#allocation2] sm:$0x1] %vm478, %v477
          %481 = vrot.lane.b32.xlu0 %v477, 120
          %v482 = vpop.permute.xlu0 %481
          %484 = vst.msk [vmem:[#allocation2 + $0x1] sm:$0x1] %vm478, %v482
          %485 = vrot.lane.b32.xlu0 %v477, 112
          %v486 = vpop.permute.xlu0 %485
          %488 = vst.msk [vmem:[#allocation2 + $0x2] sm:$0x1] %vm478, %v486
          %489 = vrot.lane.b32.xlu0 %v477, 104
          %v490 = vpop.permute.xlu0 %489
          %492 = vst.msk [vmem:[#allocation2 + $0x3] sm:$0x1] %vm478, %v490
          %493 = vrot.lane.b32.xlu0 %v477, 96
          %v494 = vpop.permute.xlu0 %493
          %496 = vst.msk [vmem:[#allocation2 + $0x4] sm:$0x1] %vm478, %v494
          %497 = vrot.lane.b32.xlu0 %v477, 88
          %v498 = vpop.permute.xlu0 %497
          %500 = vst.msk [vmem:[#allocation2 + $0x5] sm:$0x1] %vm478, %v498
          %501 = vrot.lane.b32.xlu0 %v477, 80
          %v502 = vpop.permute.xlu0 %501
          %504 = vst.msk [vmem:[#allocation2 + $0x6] sm:$0x1] %vm478, %v502
          %505 = vrot.lane.b32.xlu0 %v477, 72
          %v506 = vpop.permute.xlu0 %505
          %508 = vst.msk [vmem:[#allocation2 + $0x7] sm:$0x1] %vm478, %v506
          %v509 = vld [vmem:[#allocation2] sm:$0xff]
          %v510 = vld [vmem:[%s7] sm:$0xff]
          %vm511 = vcmask 64512
          %v513 = vsel %vm511, %v509, 0
          %515 = vmatprep.subr.mxu0 0.0
          %516 = vmatpush1.msra.mxu0 0.0
          %517 = vmatprep.subr.mxu0 0.0
          %518 = vmatpush1.msra.mxu0 0.0
          %519 = vmatprep.subr.mxu0 0.0
          %520 = vmatpush1.msra.mxu0 0.0
          %521 = vmatprep.subr.mxu0 0.0
          %522 = vmatpush1.msra.mxu0 0.0
          %523 = vmatprep.subr.mxu0 0.0
          %524 = vmatpush1.msra.mxu0 0.0
          %525 = vmatprep.subr.mxu0 0.0
          %526 = vmatpush1.msra.mxu0 0.0
          %527 = vmatprep.subr.mxu0 0.0
          %528 = vmatpush1.msra.mxu0 0.0
          %529 = vmatprep.subr.mxu0 0.0
          %530 = vmatpush1.msra.mxu0 0.0
          %531 = vmatprep.subr.mxu0 0.0
          %532 = vmatpush1.msra.mxu0 0.0
          %533 = vmatprep.subr.mxu0 0.0
          %534 = vmatpush1.msra.mxu0 0.0
          %535 = vmatprep.subr.mxu0 0.0
          %536 = vmatpush1.msra.mxu0 0.0
          %537 = vmatprep.subr.mxu0 0.0
          %538 = vmatpush1.msra.mxu0 0.0
          %539 = vmatprep.subr.mxu0 0.0
          %540 = vmatpush1.msra.mxu0 0.0
          %541 = vmatprep.subr.mxu0 0.0
          %542 = vmatpush1.msra.mxu0 0.0
          %543 = vmatprep.subr.mxu0 0.0
          %544 = vmatpush1.msra.mxu0 0.0
          %545 = vmatprep.subr.mxu0 0.0
          %546 = vmatpush1.msra.mxu0 %v510
          %547 = vmatprep.subr.mxu0 0.0
          %548 = vmatpush2.msra.mxu0 0.0
          %549 = vmatprep.subr.mxu0 0.0
          %550 = vmatpush2.msra.mxu0 0.0
          %551 = vmatprep.subr.mxu0 0.0
          %552 = vmatpush2.msra.mxu0 0.0
          %553 = vmatprep.subr.mxu0 0.0
          %554 = vmatpush2.msra.mxu0 0.0
          %555 = vmatprep.subr.mxu0 0.0
          %556 = vmatpush2.msra.mxu0 0.0
          %557 = vmatprep.subr.mxu0 0.0
          %558 = vmatpush2.msra.mxu0 0.0
          %559 = vmatprep.subr.mxu0 0.0
          %560 = vmatpush2.msra.mxu0 0.0
          %561 = vmatprep.subr.mxu0 0.0
          %562 = vmatpush2.msra.mxu0 0.0
          %563 = vmatprep.subr.mxu0 0.0
          %564 = vmatpush2.msra.mxu0 0.0
          %565 = vmatprep.subr.mxu0 0.0
          %566 = vmatpush2.msra.mxu0 0.0
          %567 = vmatprep.subr.mxu0 0.0
          %568 = vmatpush2.msra.mxu0 0.0
          %569 = vmatprep.subr.mxu0 0.0
          %570 = vmatpush2.msra.mxu0 0.0
          %571 = vmatprep.subr.mxu0 0.0
          %572 = vmatpush2.msra.mxu0 0.0
          %573 = vmatprep.subr.mxu0 0.0
          %574 = vmatpush2.msra.mxu0 0.0
          %575 = vmatprep.subr.mxu0 0.0
          %576 = vmatpush2.msra.mxu0 0.0
          %577 = vmatprep.subr.mxu0 0.0
          %578 = vmatpush2.msra.mxu0 0.0
          %579 = vmatprep.mubr.f32.mxu0 0.0
          %580 = vmatmul.mubr.f32.gmra.mxu0 %v513
          %v581 = vpop.f32.mrf.mxu0
          %v582 = vadd.f32 0.0, %v581
          %v583 = vpop.f32.mrf.mxu0
          %584 = vdwg.mxu0
          %v585 = vld [vmem:[%s6] sm:$0xff]
          %v586 = vld [vmem:[%s6 + $0x8] sm:$0xff]
          %v588 = vsel %vm511, %v585, 0
          %v591 = vsel %vm511, %v586, 0
          %593 = vmatprep.subr.mxu0 0.0
          %594 = vmatpush1.msra.mxu0 0.0
          %595 = vmatprep.subr.mxu0 0.0
          %596 = vmatpush1.msra.mxu0 0.0
          %597 = vmatprep.subr.mxu0 0.0
          %598 = vmatpush1.msra.mxu0 0.0
          %599 = vmatprep.subr.mxu0 0.0
          %600 = vmatpush1.msra.mxu0 0.0
          %601 = vmatprep.subr.mxu0 0.0
          %602 = vmatpush1.msra.mxu0 0.0
          %603 = vmatprep.subr.mxu0 0.0
          %604 = vmatpush1.msra.mxu0 0.0
          %605 = vmatprep.subr.mxu0 0.0
          %606 = vmatpush1.msra.mxu0 0.0
          %607 = vmatprep.subr.mxu0 0.0
          %608 = vmatpush1.msra.mxu0 0.0
          %609 = vmatprep.subr.mxu0 0.0
          %610 = vmatpush1.msra.mxu0 0.0
          %611 = vmatprep.subr.mxu0 0.0
          %612 = vmatpush1.msra.mxu0 0.0
          %613 = vmatprep.subr.mxu0 0.0
          %614 = vmatpush1.msra.mxu0 0.0
          %615 = vmatprep.subr.mxu0 0.0
          %616 = vmatpush1.msra.mxu0 0.0
          %617 = vmatprep.subr.mxu0 0.0
          %618 = vmatpush1.msra.mxu0 0.0
          %619 = vmatprep.subr.mxu0 0.0
          %620 = vmatpush1.msra.mxu0 0.0
          %621 = vmatprep.subr.mxu0 0.0
          %622 = vmatpush1.msra.mxu0 0.0
          %623 = vmatprep.subr.mxu0 0.0
          %624 = vmatpush1.msra.mxu0 %v582
          %625 = vmatprep.subr.mxu0 0.0
          %626 = vmatpush2.msra.mxu0 0.0
          %627 = vmatprep.subr.mxu0 0.0
          %628 = vmatpush2.msra.mxu0 0.0
          %629 = vmatprep.subr.mxu0 0.0
          %630 = vmatpush2.msra.mxu0 0.0
          %631 = vmatprep.subr.mxu0 0.0
          %632 = vmatpush2.msra.mxu0 0.0
          %633 = vmatprep.subr.mxu0 0.0
          %634 = vmatpush2.msra.mxu0 0.0
          %635 = vmatprep.subr.mxu0 0.0
          %636 = vmatpush2.msra.mxu0 0.0
          %637 = vmatprep.subr.mxu0 0.0
          %638 = vmatpush2.msra.mxu0 0.0
          %639 = vmatprep.subr.mxu0 0.0
          %640 = vmatpush2.msra.mxu0 0.0
          %641 = vmatprep.subr.mxu0 0.0
          %642 = vmatpush2.msra.mxu0 0.0
          %643 = vmatprep.subr.mxu0 0.0
          %644 = vmatpush2.msra.mxu0 0.0
          %645 = vmatprep.subr.mxu0 0.0
          %646 = vmatpush2.msra.mxu0 0.0
          %647 = vmatprep.subr.mxu0 0.0
          %648 = vmatpush2.msra.mxu0 0.0
          %649 = vmatprep.subr.mxu0 0.0
          %650 = vmatpush2.msra.mxu0 0.0
          %651 = vmatprep.subr.mxu0 0.0
          %652 = vmatpush2.msra.mxu0 0.0
          %653 = vmatprep.subr.mxu0 0.0
          %654 = vmatpush2.msra.mxu0 0.0
          %655 = vmatprep.subr.mxu0 0.0
          %656 = vmatpush2.msra.mxu0 0.0
          %657 = vmatprep.mubr.f32.mxu0 0.0
          %658 = vmatmul.mubr.f32.gmra.mxu0 %v588
          %v659 = vpop.f32.mrf.mxu0
          %v660 = vadd.f32 0.0, %v659
          %v661 = vpop.f32.mrf.mxu0
          %662 = vmatprep.mubr.f32.mxu0 0.0
          %663 = vmatmul.mubr.f32.gmra.mxu0 %v591
          %v664 = vpop.f32.mrf.mxu0
          %v665 = vadd.f32 0.0, %v664
          %v666 = vpop.f32.mrf.mxu0
          %667 = vdwg.mxu0
          %v668 = vlaneseq
          %vm669 = vcmp.ge.s32.totalorder %v668, 0
          %vm670 = vcmp.lt.s32.totalorder %v668, 16
          %vm671 = vmand %vm669, %vm670
          %672 = vst.msk [vmem:[#allocation3] sm:$0x1] %vm671, %v660
          %v675 = vunpack.c.l.s4 1966171168
          %v676 = vunpack.c.0.s8 %v675
          %v677 = vlaneseq
          %v678 = vshrl.u32 %v677, 7
          %v679 = vsub.s32 %v676, %v678
          %v680 = vrot.slane %v660, %v679
          %v681 = vcombine.high %v680, %v680
          %v683 = vunpack.c.l.s4 1966171168
          %v684 = vunpack.c.0.s8 %v683
          %v685 = vlaneseq
          %v686 = vshrl.u32 %v685, 7
          %v687 = vsub.s32 %v684, %v686
          %v688 = vrot.slane %v680, %v687
          %v690 = vunpack.c.l.s4 1966171168
          %v691 = vunpack.c.0.s8 %v690
          %v692 = vlaneseq
          %v693 = vshrl.u32 %v692, 7
          %v694 = vsub.s32 %v691, %v693
          %v695 = vrot.slane %v681, %v694
          %696 = vrot.lane.b32.xlu0 %v695, 16
          %v697 = vpop.permute.xlu0 %696
          %vm699 = vcmp.ge.s32.totalorder %v668, 16
          %vm700 = vcmp.lt.s32.totalorder %v668, 32
          %vm701 = vmand %vm699, %vm700
          %702 = vst.msk [vmem:[#allocation3] sm:$0x1] %vm701, %v697
          %v703 = vcombine.high %v688, %v688
          %704 = vrot.lane.b32.xlu0 %v703, 32
          %v705 = vpop.permute.xlu0 %704
          %vm707 = vcmp.ge.s32.totalorder %v668, 32
          %vm708 = vcmp.lt.s32.totalorder %v668, 48
          %vm709 = vmand %vm707, %vm708
          %710 = vst.msk [vmem:[#allocation3] sm:$0x1] %vm709, %v705
          %v711 = vcombine.high %v695, %v695
          %712 = vrot.lane.b32.xlu0 %v711, 48
          %v713 = vpop.permute.xlu0 %712
          %vm715 = vcmp.ge.s32.totalorder %v668, 48
          %vm716 = vcmp.lt.s32.totalorder %v668, 64
          %vm717 = vmand %vm715, %vm716
          %718 = vst.msk [vmem:[#allocation3] sm:$0x1] %vm717, %v713
          %v719 = vcombine.high %v660, %v660
          %v721 = vunpack.c.l.s4 1966171168
          %v722 = vunpack.c.0.s8 %v721
          %v723 = vlaneseq
          %v724 = vshrl.u32 %v723, 7
          %v725 = vsub.s32 %v722, %v724
          %v726 = vrot.slane %v719, %v725
          %v728 = vunpack.c.l.s4 1966171168
          %v729 = vunpack.c.0.s8 %v728
          %v730 = vlaneseq
          %v731 = vshrl.u32 %v730, 7
          %v732 = vsub.s32 %v729, %v731
          %v733 = vrot.slane %v726, %v732
          %734 = vrot.lane.b32.xlu0 %v733, 64
          %v735 = vpop.permute.xlu0 %734
          %vm737 = vcmp.ge.s32.totalorder %v668, 64
          %vm738 = vcmp.lt.s32.totalorder %v668, 80
          %vm739 = vmand %vm737, %vm738
          %740 = vst.msk [vmem:[#allocation3] sm:$0x1] %vm739, %v735
          %v741 = vcombine.high %v726, %v726
          %v743 = vunpack.c.l.s4 1966171168
          %v744 = vunpack.c.0.s8 %v743
          %v745 = vlaneseq
          %v746 = vshrl.u32 %v745, 7
          %v747 = vsub.s32 %v744, %v746
          %v748 = vrot.slane %v741, %v747
          %749 = vrot.lane.b32.xlu0 %v748, 80
          %v750 = vpop.permute.xlu0 %749
          %vm752 = vcmp.ge.s32.totalorder %v668, 80
          %vm753 = vcmp.lt.s32.totalorder %v668, 96
          %vm754 = vmand %vm752, %vm753
          %755 = vst.msk [vmem:[#allocation3] sm:$0x1] %vm754, %v750
          %v756 = vcombine.high %v733, %v733
          %757 = vrot.lane.b32.xlu0 %v756, 96
          %v758 = vpop.permute.xlu0 %757
          %vm760 = vcmp.ge.s32.totalorder %v668, 96
          %vm761 = vcmp.lt.s32.totalorder %v668, 112
          %vm762 = vmand %vm760, %vm761
          %763 = vst.msk [vmem:[#allocation3] sm:$0x1] %vm762, %v758
          %v764 = vcombine.high %v748, %v748
          %765 = vrot.lane.b32.xlu0 %v764, 112
          %v766 = vpop.permute.xlu0 %765
          %vm768 = vcmp.ge.s32.totalorder %v668, 112
          %vm769 = vcmp.lt.s32.totalorder %v668, 128
          %vm770 = vmand %vm768, %vm769
          %771 = vst.msk [vmem:[#allocation3] sm:$0x1] %vm770, %v766
          %772 = vst.msk [vmem:[#allocation3 + $0x1] sm:$0x1] %vm671, %v665
          %v775 = vunpack.c.l.s4 1966171168
          %v776 = vunpack.c.0.s8 %v775
          %v777 = vlaneseq
          %v778 = vshrl.u32 %v777, 7
          %v779 = vsub.s32 %v776, %v778
          %v780 = vrot.slane %v665, %v779
          %v781 = vcombine.high %v780, %v780
          %v783 = vunpack.c.l.s4 1966171168
          %v784 = vunpack.c.0.s8 %v783
          %v785 = vlaneseq
          %v786 = vshrl.u32 %v785, 7
          %v787 = vsub.s32 %v784, %v786
          %v788 = vrot.slane %v780, %v787
          %v790 = vunpack.c.l.s4 1966171168
          %v791 = vunpack.c.0.s8 %v790
          %v792 = vlaneseq
          %v793 = vshrl.u32 %v792, 7
          %v794 = vsub.s32 %v791, %v793
          %v795 = vrot.slane %v781, %v794
          %796 = vrot.lane.b32.xlu0 %v795, 16
          %v797 = vpop.permute.xlu0 %796
          %799 = vst.msk [vmem:[#allocation3 + $0x1] sm:$0x1] %vm701, %v797
          %v800 = vcombine.high %v788, %v788
          %801 = vrot.lane.b32.xlu0 %v800, 32
          %v802 = vpop.permute.xlu0 %801
          %804 = vst.msk [vmem:[#allocation3 + $0x1] sm:$0x1] %vm709, %v802
          %v805 = vcombine.high %v795, %v795
          %806 = vrot.lane.b32.xlu0 %v805, 48
          %v807 = vpop.permute.xlu0 %806
          %809 = vst.msk [vmem:[#allocation3 + $0x1] sm:$0x1] %vm717, %v807
          %v810 = vcombine.high %v665, %v665
          %v812 = vunpack.c.l.s4 1966171168
          %v813 = vunpack.c.0.s8 %v812
          %v814 = vlaneseq
          %v815 = vshrl.u32 %v814, 7
          %v816 = vsub.s32 %v813, %v815
          %v817 = vrot.slane %v810, %v816
          %v819 = vunpack.c.l.s4 1966171168
          %v820 = vunpack.c.0.s8 %v819
          %v821 = vlaneseq
          %v822 = vshrl.u32 %v821, 7
          %v823 = vsub.s32 %v820, %v822
          %v824 = vrot.slane %v817, %v823
          %825 = vrot.lane.b32.xlu0 %v824, 64
          %v826 = vpop.permute.xlu0 %825
          %828 = vst.msk [vmem:[#allocation3 + $0x1] sm:$0x1] %vm739, %v826
          %v829 = vcombine.high %v817, %v817
          %v831 = vunpack.c.l.s4 1966171168
          %v832 = vunpack.c.0.s8 %v831
          %v833 = vlaneseq
          %v834 = vshrl.u32 %v833, 7
          %v835 = vsub.s32 %v832, %v834
          %v836 = vrot.slane %v829, %v835
          %837 = vrot.lane.b32.xlu0 %v836, 80
          %v838 = vpop.permute.xlu0 %837
          %840 = vst.msk [vmem:[#allocation3 + $0x1] sm:$0x1] %vm754, %v838
          %v841 = vcombine.high %v824, %v824
          %842 = vrot.lane.b32.xlu0 %v841, 96
          %v843 = vpop.permute.xlu0 %842
          %845 = vst.msk [vmem:[#allocation3 + $0x1] sm:$0x1] %vm762, %v843
          %v846 = vcombine.high %v836, %v836
          %847 = vrot.lane.b32.xlu0 %v846, 112
          %v848 = vpop.permute.xlu0 %847
          %850 = vst.msk [vmem:[#allocation3 + $0x1] sm:$0x1] %vm770, %v848
        $region56: #{tpu_custom_call.1} parent=51 // pred_fallthru
          _
        %v851 = vld [vmem:[#allocation3] sm:$0x3]
        %v852 = vld [vmem:[%s353] sm:$0xff]
        %v854 = vlaneseq
        %v855 = vshrl.u32 %v854, 7
        %v856 = vsub.s32 0, %v855
        %v857 = vrot.slane %v851, %v856
        %v858 = vlaneseq
        %v859 = vshrl.u32 %v858, 7
        %v860 = vsub.s32 1, %v859
        %v861 = vrot.slane %v851, %v860
        %v865 = vcombine.high %v852, %v852
        %v867 = vmul.f32 %v857, %v852
        %v868 = vmul.f32 %v861, %v865
        %v871 = vcombine.low %v867, %v868
        %873 = vst [vmem:[%s339] sm:$0xff] %v871
        %s874 = sand.u32 %s226, 1
        %s875 = scalar_lea.sflag [#allocation6], %s874
        %s876 = sand.u32 %s226, 1
        %s877 = smul.addr %s876, 8
        %s878 = scalar_lea.vmem [#allocation5], %s877
        // Predicated region
        $region57: #{tpu_custom_call.1} parent=51 // pred_check
          %p879 = pneg %p236
        $region58: #{tpu_custom_call.1} parent=51 // pred_check_branch
          %881 = sbr.rel (%p879) target = $region60
        $region59: #{tpu_custom_call.1} parent=51 // pred_region
          %s883 = ssub.s32 128, 128
          %884 = vsyncadd %s875, %s883
          %s885 = smul.addr %s29, 2
          %s886 = smul.addr %s28, 2
          %s887 = sadd.s32 %s885, %s886
          %s888 = smul.addr %s887, 64
          %s889 = scalar_lea.hbm %s8, %s888
          %s891 = sshll.u32 %s878, 4
          %s892 = int_to_ptr.vmem [resolvable:$true] %s891
          %894 = dma.vmem_to_hbm [thread:$0]  %s892, 128, %s889, %s875
        $region60: #{tpu_custom_call.1} parent=51 // pred_fallthru
          _
      $region52: #{tpu_custom_call.1} parent=5 // pred_fallthru
        _
      %p895 = scmp.le.s32.totalorder 2, %s19
      // Predicated region
      $region61: #{tpu_custom_call.1} parent=5 // pred_check
        %p896 = pneg %p895
      $region62: #{tpu_custom_call.1} parent=5 // pred_check_branch
        %898 = sbr.rel (%p896) target = $region64
      $region63: #{tpu_custom_call.1} parent=5 // pred_region
        %s899 = ssub.s32 %s19, 2
        // Predicated region
        $region65: #{tpu_custom_call.1} parent=63 // pred_check
          %p900 = pneg %p242
        $region66: #{tpu_custom_call.1} parent=63 // pred_check_branch
          %902 = sbr.rel (%p900) target = $region68
        $region67: #{tpu_custom_call.1} parent=63 // pred_region
          %s903 = sand.u32 %s227, 1
          %s904 = scalar_lea.sflag [#allocation6], %s903
          %s905 = sand.u32 %s227, 1
          %s906 = smul.addr %s905, 8
          %s907 = scalar_lea.vmem [#allocation5], %s906
          %908 = dma.done %s904, 128
        $region68: #{tpu_custom_call.1} parent=63 // pred_fallthru
          _
      $region64: #{tpu_custom_call.1} parent=5 // pred_fallthru
        _
    $region6: #{tpu_custom_call.1} parent=1 // loop_footer
      %s23 = sadd.s32 1, %s19
    $region7: #{tpu_custom_call.1} parent=1 // loop_footer_branch
      %18 = sbr.rel target = $region3
    $region8: #{tpu_custom_call.1} parent=1 // loop_exit
      _
    %909 = vsyncpa [#allocation6], 1
    %s910 = scalar_lea.sflag [#allocation6], 1
    %911 = vsyncpa %s910, 1

</llo_original>
